<compile_context>
chip_gen: v7x
topology: tpu7x:2x2x1
jax: 0.10.0
libtpu: 0.0.40
codegen_flags: <defaults>
</compile_context>

<pallas_src>
import functools

import numpy as np
import jax
import jax.numpy as jnp
from jax import lax
from jax.experimental import pallas as pl
from jax.experimental.pallas import tpu as pltpu

_EPS = 1e-5


# --------------------------------------------------------------------------- #
# Fused kernel
# --------------------------------------------------------------------------- #
def _deblock_kernel(x_ref, taps1_ref, taps2_ref, csum_ref, bn_ref, o_ref,
                    *, N, H, W, C, compute_dtype):
    """Whole DeBasicBlock forward on the full batch (lane-packed layout).

    x_ref     : (N*H, W*C)    lane-packed NHWC activation, f32
    taps*_ref : (3*W*C, W*C)  block-banded (Toeplitz) conv tap matrices
    csum_ref  : (W*C, W*C)    0/1 matrix, csum[i,j] = (i%C == j%C): reduces
                              per-lane sums to per-channel sums, already
                              lane-tiled for the BN scale/shift apply
    bn_ref    : (4, W*C)      lane-tiled [gamma1, beta1, gamma2, beta2], f32
    o_ref     : (N*H, W*C)    output, f32, lane-dense store
    """
    NH = N * H
    WC = W * C
    inv_cnt = 1.0 / float(N * H * W)

    def conv3x3(a, taps_ref):
        """3x3 conv (s=1, p=1) as one MXU matmul with a banded LHS.

        LHS column blocks [0,WC)/[WC,2WC)/[2WC,3WC) hold row i-1 / i / i+1 of
        the same image (zero at image boundaries); the horizontal padding and
        the kx offsets live inside the band structure of the tap matrix.
        """
        a = a.astype(compute_dtype)
        zrow = jnp.zeros((1, WC), compute_dtype)
        ups, dns = [], []
        for n in range(N):                       # N is small & static
            img = a[n * H:(n + 1) * H, :]
            ups.append(jnp.concatenate([zrow, img[:H - 1, :]], axis=0))
            dns.append(jnp.concatenate([img[1:, :], zrow], axis=0))
        lhs = jnp.concatenate(
            [jnp.concatenate(ups, axis=0), a, jnp.concatenate(dns, axis=0)],
            axis=1)                              # (NH, 3*WC)
        return jnp.dot(lhs, taps_ref[...],
                       preferred_element_type=jnp.float32)   # (NH, WC) f32

    def bn_scale_shift(y, gamma_t, beta_t):
        """Exact batch statistics (centered M2), results lane-tiled (1, WC)."""
        csum = csum_ref[...]
        mean_t = jnp.dot(jnp.sum(y, axis=0, keepdims=True), csum,
                         preferred_element_type=jnp.float32) * inv_cnt
        d = y - mean_t
        var_t = jnp.dot(jnp.sum(d * d, axis=0, keepdims=True), csum,
                        preferred_element_type=jnp.float32) * inv_cnt
        scale = gamma_t * lax.rsqrt(var_t + _EPS)
        shift = beta_t - mean_t * scale
        return scale, shift

    x = x_ref[...]                                            # (NH, WC) f32

    # conv1 -> BN1 -> ReLU
    y1 = conv3x3(x, taps1_ref)
    s1, sh1 = bn_scale_shift(y1, bn_ref[0:1, :], bn_ref[1:2, :])
    h1 = jnp.maximum(y1 * s1 + sh1, 0.0)

    # conv2 -> BN2 -> +residual -> ReLU  (stride=1, downsample=None => res = x)
    y2 = conv3x3(h1, taps2_ref)
    s2, sh2 = bn_scale_shift(y2, bn_ref[2:3, :], bn_ref[3:4, :])
    o_ref[...] = jnp.maximum(y2 * s2 + sh2 + x_ref[...], 0.0)


# --------------------------------------------------------------------------- #
# Parameter preparation (wrapper side, tiny)
# --------------------------------------------------------------------------- #
def _toeplitz_taps(w_t, W, compute_dtype):
    """ConvTranspose2d weight (Cin, Cout, 3, 3), s=1, p=1  ->  block-banded
    (3*W*Cin, W*Cout) tap matrix of the equivalent plain 3x3 conv, so that
    banded_LHS(NH, 3*W*Cin) @ taps = lane-packed conv output (NH, W*Cout)."""
    cin, cout = w_t.shape[0], w_t.shape[1]
    # Equivalent plain-conv weights, laid out (kh, kw, cin, cout):
    # wc[kh, kw, ci, co] = w_t[ci, co, 2-kh, 2-kw]
    wc = jnp.flip(jnp.transpose(w_t, (2, 3, 0, 1)), axis=(0, 1))
    # sel[kw, wi, wo] = 1 iff wi == wo + kw - 1 (horizontal zero-pad folded in)
    sel = np.zeros((3, W, W), np.float32)
    for kw in range(3):
        for wo in range(W):
            wi = wo + kw - 1
            if 0 <= wi < W:
                sel[kw, wi, wo] = 1.0
    taps = jnp.einsum("kab,hkio->haibo", sel, wc)     # (3, W, cin, W, cout)
    return taps.reshape(3 * W * cin, W * cout).astype(compute_dtype)


def _channel_sum_matrix(W, C):
    """(W*C, W*C) 0/1 matrix: result lane j gets the sum over all lanes of the
    same channel (i % C == j % C) -> per-channel totals, lane-tiled."""
    i = np.arange(W * C)
    return jnp.asarray((i[:, None] % C == i[None, :] % C).astype(np.float32))


def deblock_forward(x_nchw, w1, g1, b1, w2, g2, b2,
                    compute_dtype=jnp.bfloat16):
    """DeBasicBlock forward.  x_nchw: (N, C, H, W) float32 (PyTorch layout)."""
    N, C, H, W = x_nchw.shape
    NH, WC = N * H, W * C

    x2d = jnp.transpose(x_nchw, (0, 2, 3, 1)).astype(jnp.float32)
    x2d = x2d.reshape(NH, WC)                         # lane-packed NHWC slab

    taps1 = _toeplitz_taps(w1, W, compute_dtype)
    taps2 = _toeplitz_taps(w2, W, compute_dtype)
    csum = _channel_sum_matrix(W, C)
    bn = jnp.stack([jnp.tile(g1.astype(jnp.float32), W),
                    jnp.tile(b1.astype(jnp.float32), W),
                    jnp.tile(g2.astype(jnp.float32), W),
                    jnp.tile(b2.astype(jnp.float32), W)], axis=0)   # (4, WC)

    kern = functools.partial(_deblock_kernel, N=N, H=H, W=W, C=C,
                             compute_dtype=compute_dtype)
    full = lambda i: (0, 0)
    out2d = pl.pallas_call(
        kern,
        grid=(1,),
        in_specs=[
            pl.BlockSpec((NH, WC), full),
            pl.BlockSpec((3 * WC, WC), full),
            pl.BlockSpec((3 * WC, WC), full),
            pl.BlockSpec((WC, WC), full),
            pl.BlockSpec((4, WC), full),
        ],
        out_specs=pl.BlockSpec((NH, WC), full),
        out_shape=jax.ShapeDtypeStruct((NH, WC), jnp.float32),
        compiler_params=pltpu.CompilerParams(
            dimension_semantics=("arbitrary",)),
    )(x2d, taps1, taps2, csum, bn)

    out = out2d.reshape(N, H, W, C)
    return jnp.transpose(out, (0, 3, 1, 2))           # -> NCHW


# --------------------------------------------------------------------------- #
# Pure-JAX reference
# --------------------------------------------------------------------------- #
def _ref_deconv3x3(x, w):
    w_conv = jnp.flip(jnp.transpose(w, (1, 0, 2, 3)), axis=(2, 3))  # (O,I,3,3)
    return lax.conv_general_dilated(x, w_conv, (1, 1), ((1, 1), (1, 1)),
                                    dimension_numbers=("NCHW", "OIHW", "NCHW"))


def _ref_bn(y, g, b):
    mean = jnp.mean(y, axis=(0, 2, 3), keepdims=True)
    var = jnp.var(y, axis=(0, 2, 3), keepdims=True)
    return (y - mean) * lax.rsqrt(var + _EPS) * g.reshape(1, -1, 1, 1) \
        + b.reshape(1, -1, 1, 1)


def _reference(x, w1, g1, b1, w2, g2, b2):
    h = jnp.maximum(_ref_bn(_ref_deconv3x3(x, w1), g1, b1), 0.0)
    h = _ref_bn(_ref_deconv3x3(h, w2), g2, b2)
    return jnp.maximum(h + x, 0.0)


# --------------------------------------------------------------------------- #
if __name__ == "__main__":
    # stride=1, downsample=None -> inplanes == planes.  W*C == 128 (lane-dense).
    N, C, H, W = 2, 8, 16, 16
    key = jax.random.PRNGKey(0)
    k = jax.random.split(key, 7)

    x = jax.random.normal(k[0], (N, C, H, W), jnp.float32)
    # ConvTranspose2d weight layout: (in_channels, out_channels, kH, kW), bias=False
    w1 = jax.random.normal(k[1], (C, C, 3, 3), jnp.float32) * 0.1
    w2 = jax.random.normal(k[2], (C, C, 3, 3), jnp.float32) * 0.1
    g1 = 1.0 + 0.1 * jax.random.normal(k[3], (C,), jnp.float32)
    b1 = 0.1 * jax.random.normal(k[4], (C,), jnp.float32)
    g2 = 1.0 + 0.1 * jax.random.normal(k[5], (C,), jnp.float32)
    b2 = 0.1 * jax.random.normal(k[6], (C,), jnp.float32)

    ref = _reference(x, w1, g1, b1, w2, g2, b2)

    # Exact-math path (f32 MXU operands): tight correctness check.
    out_f32 = deblock_forward(x, w1, g1, b1, w2, g2, b2,
                              compute_dtype=jnp.float32)
    jax.block_until_ready(out_f32)
    assert out_f32.shape == (N, C, H, W)
    assert jnp.allclose(out_f32, ref, atol=1e-3, rtol=1e-3), "f32 path mismatch"

    # Fast path (bf16 MXU operands, f32 accumulation / BN / residual math):
    # bf16-rounding-level agreement; exact semantics proven by the f32 path.
    out_bf16 = deblock_forward(x, w1, g1, b1, w2, g2, b2,
                               compute_dtype=jnp.bfloat16)
    jax.block_until_ready(out_bf16)
    assert jnp.allclose(out_bf16, ref, atol=1e-1, rtol=1e-1), "bf16 path mismatch"

    print("KERNEL_OK")
</pallas_src>

<mosaic_0001>
module attributes {stable_mosaic.version = 11 : i64} {
  func.func @_deblock_kernel(%arg0: i32, %arg1: memref<32x128xf32, #tpu.memory_space<vmem>>, %arg2: memref<384x128xf32, #tpu.memory_space<vmem>>, %arg3: memref<384x128xf32, #tpu.memory_space<vmem>>, %arg4: memref<128x128xf32, #tpu.memory_space<vmem>>, %arg5: memref<4x128xf32, #tpu.memory_space<vmem>>, %arg6: memref<32x128xf32, #tpu.memory_space<vmem>>) attributes {dimension_semantics = [#tpu.dimension_semantics<arbitrary>], iteration_bounds = array<i64: 1>, scalar_prefetch = 0 : i64, scratch_operands = 0 : i64, tpu.core_type = #tpu.core_type<tc>, window_params = [{pipeline_mode = #tpu.pipeline_mode<synchronous>, transform_indices = @transform_0, window_bounds = array<i64: 32, 128>}, {pipeline_mode = #tpu.pipeline_mode<synchronous>, transform_indices = @transform_1, window_bounds = array<i64: 384, 128>}, {pipeline_mode = #tpu.pipeline_mode<synchronous>, transform_indices = @transform_2, window_bounds = array<i64: 384, 128>}, {pipeline_mode = #tpu.pipeline_mode<synchronous>, transform_indices = @transform_3, window_bounds = array<i64: 128, 128>}, {pipeline_mode = #tpu.pipeline_mode<synchronous>, transform_indices = @transform_4, window_bounds = array<i64: 4, 128>}, {pipeline_mode = #tpu.pipeline_mode<synchronous>, transform_indices = @transform_5, window_bounds = array<i64: 32, 128>}]} {
    %c0 = arith.constant 0 : index
    %c0_0 = arith.constant 0 : index
    %0 = vector.load %arg1[%c0, %c0_0] : memref<32x128xf32, #tpu.memory_space<vmem>>, vector<32x128xf32>
    %cst = arith.constant 0.000000e+00 : f32
    %1 = vector.broadcast %cst : f32 to vector<1x128xf32>
    %2 = vector.extract_strided_slice %0 {offsets = [0, 0], sizes = [16, 128], strides = [1, 1]} : vector<32x128xf32> to vector<16x128xf32>
    %3 = vector.extract_strided_slice %2 {offsets = [0, 0], sizes = [15, 128], strides = [1, 1]} : vector<16x128xf32> to vector<15x128xf32>
    %4 = tpu.concatenate %1, %3 in 0 : vector<1x128xf32>, vector<15x128xf32> -> vector<16x128xf32>
    %5 = vector.extract_strided_slice %2 {offsets = [1, 0], sizes = [15, 128], strides = [1, 1]} : vector<16x128xf32> to vector<15x128xf32>
    %6 = tpu.concatenate %5, %1 in 0 : vector<15x128xf32>, vector<1x128xf32> -> vector<16x128xf32>
    %7 = vector.extract_strided_slice %0 {offsets = [16, 0], sizes = [16, 128], strides = [1, 1]} : vector<32x128xf32> to vector<16x128xf32>
    %8 = vector.extract_strided_slice %7 {offsets = [0, 0], sizes = [15, 128], strides = [1, 1]} : vector<16x128xf32> to vector<15x128xf32>
    %9 = tpu.concatenate %1, %8 in 0 : vector<1x128xf32>, vector<15x128xf32> -> vector<16x128xf32>
    %10 = vector.extract_strided_slice %7 {offsets = [1, 0], sizes = [15, 128], strides = [1, 1]} : vector<16x128xf32> to vector<15x128xf32>
    %11 = tpu.concatenate %10, %1 in 0 : vector<15x128xf32>, vector<1x128xf32> -> vector<16x128xf32>
    %12 = tpu.concatenate %4, %9 in 0 : vector<16x128xf32>, vector<16x128xf32> -> vector<32x128xf32>
    %13 = tpu.concatenate %6, %11 in 0 : vector<16x128xf32>, vector<16x128xf32> -> vector<32x128xf32>
    %14 = tpu.concatenate %12, %0, %13 in 1 : vector<32x128xf32>, vector<32x128xf32>, vector<32x128xf32> -> vector<32x384xf32>
    %c0_1 = arith.constant 0 : index
    %c0_2 = arith.constant 0 : index
    %15 = vector.load %arg2[%c0_1, %c0_2] : memref<384x128xf32, #tpu.memory_space<vmem>>, vector<384x128xf32>
    %cst_3 = arith.constant dense<0.000000e+00> : vector<32x128xf32>
    %16 = tpu.matmul %14, %15, %cst_3 {dimension_numbers = #tpu.dot_dimension_numbers<[1], [0], [0], [1], [0, 0, 1, 1], [], []>} : vector<32x384xf32>, vector<384x128xf32>, vector<32x128xf32> -> vector<32x128xf32>
    %c0_4 = arith.constant 0 : index
    %c0_5 = arith.constant 0 : index
    %17 = vector.load %arg5[%c0_4, %c0_5] : memref<4x128xf32, #tpu.memory_space<vmem>>, vector<1x128xf32>
    %c1 = arith.constant 1 : index
    %c0_6 = arith.constant 0 : index
    %18 = vector.load %arg5[%c1, %c0_6] : memref<4x128xf32, #tpu.memory_space<vmem>>, vector<1x128xf32>
    %c0_7 = arith.constant 0 : index
    %c0_8 = arith.constant 0 : index
    %19 = vector.load %arg4[%c0_7, %c0_8] : memref<128x128xf32, #tpu.memory_space<vmem>>, vector<128x128xf32>
    %cst_9 = arith.constant dense<0.000000e+00> : vector<128xf32>
    %20 = vector.multi_reduction <add>, %16, %cst_9 [0] : vector<32x128xf32> to vector<128xf32>
    %21 = vector.shape_cast %20 : vector<128xf32> to vector<1x128xf32>
    %cst_10 = arith.constant dense<0.000000e+00> : vector<1x128xf32>
    %22 = tpu.matmul %21, %19, %cst_10 {dimension_numbers = #tpu.dot_dimension_numbers<[1], [0], [0], [1], [0, 0, 1, 1], [], []>} : vector<1x128xf32>, vector<128x128xf32>, vector<1x128xf32> -> vector<1x128xf32>
    %cst_11 = arith.constant 0.001953125 : f32
    %23 = vector.broadcast %cst_11 : f32 to vector<1x128xf32>
    %24 = arith.mulf %22, %23 : vector<1x128xf32>
    %25 = vector.broadcast %24 : vector<1x128xf32> to vector<32x128xf32>
    %26 = arith.subf %16, %25 : vector<32x128xf32>
    %27 = arith.mulf %26, %26 : vector<32x128xf32>
    %cst_12 = arith.constant dense<0.000000e+00> : vector<128xf32>
    %28 = vector.multi_reduction <add>, %27, %cst_12 [0] : vector<32x128xf32> to vector<128xf32>
    %29 = vector.shape_cast %28 : vector<128xf32> to vector<1x128xf32>
    %cst_13 = arith.constant dense<0.000000e+00> : vector<1x128xf32>
    %30 = tpu.matmul %29, %19, %cst_13 {dimension_numbers = #tpu.dot_dimension_numbers<[1], [0], [0], [1], [0, 0, 1, 1], [], []>} : vector<1x128xf32>, vector<128x128xf32>, vector<1x128xf32> -> vector<1x128xf32>
    %cst_14 = arith.constant 0.001953125 : f32
    %31 = vector.broadcast %cst_14 : f32 to vector<1x128xf32>
    %32 = arith.mulf %30, %31 : vector<1x128xf32>
    %cst_15 = arith.constant 9.99999974E-6 : f32
    %33 = vector.broadcast %cst_15 : f32 to vector<1x128xf32>
    %34 = arith.addf %32, %33 : vector<1x128xf32>
    %35 = math.rsqrt %34 : vector<1x128xf32>
    %36 = arith.mulf %17, %35 : vector<1x128xf32>
    %37 = arith.mulf %24, %36 : vector<1x128xf32>
    %38 = arith.subf %18, %37 : vector<1x128xf32>
    %39 = vector.broadcast %36 : vector<1x128xf32> to vector<32x128xf32>
    %40 = arith.mulf %16, %39 : vector<32x128xf32>
    %41 = vector.broadcast %38 : vector<1x128xf32> to vector<32x128xf32>
    %42 = arith.addf %40, %41 : vector<32x128xf32>
    %cst_16 = arith.constant 0.000000e+00 : f32
    %43 = vector.broadcast %cst_16 : f32 to vector<32x128xf32>
    %44 = arith.maximumf %42, %43 : vector<32x128xf32>
    %cst_17 = arith.constant 0.000000e+00 : f32
    %45 = vector.broadcast %cst_17 : f32 to vector<1x128xf32>
    %46 = vector.extract_strided_slice %44 {offsets = [0, 0], sizes = [16, 128], strides = [1, 1]} : vector<32x128xf32> to vector<16x128xf32>
    %47 = vector.extract_strided_slice %46 {offsets = [0, 0], sizes = [15, 128], strides = [1, 1]} : vector<16x128xf32> to vector<15x128xf32>
    %48 = tpu.concatenate %45, %47 in 0 : vector<1x128xf32>, vector<15x128xf32> -> vector<16x128xf32>
    %49 = vector.extract_strided_slice %46 {offsets = [1, 0], sizes = [15, 128], strides = [1, 1]} : vector<16x128xf32> to vector<15x128xf32>
    %50 = tpu.concatenate %49, %45 in 0 : vector<15x128xf32>, vector<1x128xf32> -> vector<16x128xf32>
    %51 = vector.extract_strided_slice %44 {offsets = [16, 0], sizes = [16, 128], strides = [1, 1]} : vector<32x128xf32> to vector<16x128xf32>
    %52 = vector.extract_strided_slice %51 {offsets = [0, 0], sizes = [15, 128], strides = [1, 1]} : vector<16x128xf32> to vector<15x128xf32>
    %53 = tpu.concatenate %45, %52 in 0 : vector<1x128xf32>, vector<15x128xf32> -> vector<16x128xf32>
    %54 = vector.extract_strided_slice %51 {offsets = [1, 0], sizes = [15, 128], strides = [1, 1]} : vector<16x128xf32> to vector<15x128xf32>
    %55 = tpu.concatenate %54, %45 in 0 : vector<15x128xf32>, vector<1x128xf32> -> vector<16x128xf32>
    %56 = tpu.concatenate %48, %53 in 0 : vector<16x128xf32>, vector<16x128xf32> -> vector<32x128xf32>
    %57 = tpu.concatenate %50, %55 in 0 : vector<16x128xf32>, vector<16x128xf32> -> vector<32x128xf32>
    %58 = tpu.concatenate %56, %44, %57 in 1 : vector<32x128xf32>, vector<32x128xf32>, vector<32x128xf32> -> vector<32x384xf32>
    %c0_18 = arith.constant 0 : index
    %c0_19 = arith.constant 0 : index
    %59 = vector.load %arg3[%c0_18, %c0_19] : memref<384x128xf32, #tpu.memory_space<vmem>>, vector<384x128xf32>
    %cst_20 = arith.constant dense<0.000000e+00> : vector<32x128xf32>
    %60 = tpu.matmul %58, %59, %cst_20 {dimension_numbers = #tpu.dot_dimension_numbers<[1], [0], [0], [1], [0, 0, 1, 1], [], []>} : vector<32x384xf32>, vector<384x128xf32>, vector<32x128xf32> -> vector<32x128xf32>
    %c2 = arith.constant 2 : index
    %c0_21 = arith.constant 0 : index
    %61 = vector.load %arg5[%c2, %c0_21] : memref<4x128xf32, #tpu.memory_space<vmem>>, vector<1x128xf32>
    %c3 = arith.constant 3 : index
    %c0_22 = arith.constant 0 : index
    %62 = vector.load %arg5[%c3, %c0_22] : memref<4x128xf32, #tpu.memory_space<vmem>>, vector<1x128xf32>
    %c0_23 = arith.constant 0 : index
    %c0_24 = arith.constant 0 : index
    %63 = vector.load %arg4[%c0_23, %c0_24] : memref<128x128xf32, #tpu.memory_space<vmem>>, vector<128x128xf32>
    %cst_25 = arith.constant dense<0.000000e+00> : vector<128xf32>
    %64 = vector.multi_reduction <add>, %60, %cst_25 [0] : vector<32x128xf32> to vector<128xf32>
    %65 = vector.shape_cast %64 : vector<128xf32> to vector<1x128xf32>
    %cst_26 = arith.constant dense<0.000000e+00> : vector<1x128xf32>
    %66 = tpu.matmul %65, %63, %cst_26 {dimension_numbers = #tpu.dot_dimension_numbers<[1], [0], [0], [1], [0, 0, 1, 1], [], []>} : vector<1x128xf32>, vector<128x128xf32>, vector<1x128xf32> -> vector<1x128xf32>
    %cst_27 = arith.constant 0.001953125 : f32
    %67 = vector.broadcast %cst_27 : f32 to vector<1x128xf32>
    %68 = arith.mulf %66, %67 : vector<1x128xf32>
    %69 = vector.broadcast %68 : vector<1x128xf32> to vector<32x128xf32>
    %70 = arith.subf %60, %69 : vector<32x128xf32>
    %71 = arith.mulf %70, %70 : vector<32x128xf32>
    %cst_28 = arith.constant dense<0.000000e+00> : vector<128xf32>
    %72 = vector.multi_reduction <add>, %71, %cst_28 [0] : vector<32x128xf32> to vector<128xf32>
    %73 = vector.shape_cast %72 : vector<128xf32> to vector<1x128xf32>
    %cst_29 = arith.constant dense<0.000000e+00> : vector<1x128xf32>
    %74 = tpu.matmul %73, %63, %cst_29 {dimension_numbers = #tpu.dot_dimension_numbers<[1], [0], [0], [1], [0, 0, 1, 1], [], []>} : vector<1x128xf32>, vector<128x128xf32>, vector<1x128xf32> -> vector<1x128xf32>
    %cst_30 = arith.constant 0.001953125 : f32
    %75 = vector.broadcast %cst_30 : f32 to vector<1x128xf32>
    %76 = arith.mulf %74, %75 : vector<1x128xf32>
    %cst_31 = arith.constant 9.99999974E-6 : f32
    %77 = vector.broadcast %cst_31 : f32 to vector<1x128xf32>
    %78 = arith.addf %76, %77 : vector<1x128xf32>
    %79 = math.rsqrt %78 : vector<1x128xf32>
    %80 = arith.mulf %61, %79 : vector<1x128xf32>
    %81 = arith.mulf %68, %80 : vector<1x128xf32>
    %82 = arith.subf %62, %81 : vector<1x128xf32>
    %83 = vector.broadcast %80 : vector<1x128xf32> to vector<32x128xf32>
    %84 = arith.mulf %60, %83 : vector<32x128xf32>
    %85 = vector.broadcast %82 : vector<1x128xf32> to vector<32x128xf32>
    %86 = arith.addf %84, %85 : vector<32x128xf32>
    %c0_32 = arith.constant 0 : index
    %c0_33 = arith.constant 0 : index
    %87 = vector.load %arg1[%c0_32, %c0_33] : memref<32x128xf32, #tpu.memory_space<vmem>>, vector<32x128xf32>
    %88 = arith.addf %86, %87 : vector<32x128xf32>
    %cst_34 = arith.constant 0.000000e+00 : f32
    %89 = vector.broadcast %cst_34 : f32 to vector<32x128xf32>
    %90 = arith.maximumf %88, %89 : vector<32x128xf32>
    %c0_35 = arith.constant 0 : index
    %c0_36 = arith.constant 0 : index
    %91 = vector.load %arg6[%c0_35, %c0_36] : memref<32x128xf32, #tpu.memory_space<vmem>>, vector<32x128xf32>
    tpu.vector_store %arg6[%c0_35, %c0_36], %90 {strides = array<i32>} : memref<32x128xf32, #tpu.memory_space<vmem>>, vector<32x128xf32>,
    return
  }
  func.func @transform_0(%arg0: i32) -> (i32, i32) {
    %c0_i32 = arith.constant 0 : i32
    %c0_i32_0 = arith.constant 0 : i32
    %c0_i32_1 = arith.constant 0 : i32
    return %c0_i32, %c0_i32_0 : i32, i32
  }
  func.func @transform_1(%arg0: i32) -> (i32, i32) {
    %c0_i32 = arith.constant 0 : i32
    %c0_i32_0 = arith.constant 0 : i32
    %c0_i32_1 = arith.constant 0 : i32
    return %c0_i32, %c0_i32_0 : i32, i32
  }
  func.func @transform_2(%arg0: i32) -> (i32, i32) {
    %c0_i32 = arith.constant 0 : i32
    %c0_i32_0 = arith.constant 0 : i32
    %c0_i32_1 = arith.constant 0 : i32
    return %c0_i32, %c0_i32_0 : i32, i32
  }
  func.func @transform_3(%arg0: i32) -> (i32, i32) {
    %c0_i32 = arith.constant 0 : i32
    %c0_i32_0 = arith.constant 0 : i32
    %c0_i32_1 = arith.constant 0 : i32
    return %c0_i32, %c0_i32_0 : i32, i32
  }
  func.func @transform_4(%arg0: i32) -> (i32, i32) {
    %c0_i32 = arith.constant 0 : i32
    %c0_i32_0 = arith.constant 0 : i32
    %c0_i32_1 = arith.constant 0 : i32
    return %c0_i32, %c0_i32_0 : i32, i32
  }
  func.func @transform_5(%arg0: i32) -> (i32, i32) {
    %c0_i32 = arith.constant 0 : i32
    %c0_i32_0 = arith.constant 0 : i32
    %c0_i32_1 = arith.constant 0 : i32
    return %c0_i32, %c0_i32_0 : i32, i32
  }
}

</mosaic_0001>

<llo_original>
// kernel: tpu_custom_call.1
$region0: #{tpu_custom_call.1}
  #allocation0 [shape = 'u32[]', space=smem, size = 0x4, offset = 0x4, fixed_abs, tag = 'smem constant byte address 0x4 - core index']
  #allocation1 [shape = 'u32[144,128]{1,0:T(1,128)}', space=vmem, size = 0x12000, scoped, tag = 'internal scratch']
  %s0 = inlined_call_operand.hbm [shape: f32[32,128], index: 0, kind: input, shape index: {}]
  %s1 = inlined_call_operand.hbm [shape: f32[384,128], index: 1, kind: input, shape index: {}]
  %s2 = inlined_call_operand.hbm [shape: f32[384,128], index: 2, kind: input, shape index: {}]
  %s3 = inlined_call_operand.hbm [shape: f32[128,128], index: 3, kind: input, shape index: {}]
  %s4 = inlined_call_operand.vmem [shape: f32[4,128], index: 4, kind: input, shape index: {}]
  %s5 = inlined_call_operand.hbm [shape: f32[32,128], index: 5, kind: output, shape index: {}]
  %s6 = sld [smem:[#allocation0]]
  $region46: #{tpu_custom_call.1} parent=0
    _
  %s8 = ssub.s32 1, %s6
  %s9 = scalar_select 0, %s8, %s6
  $region1: #{tpu_custom_call.1} parent=0
    #allocation2 [shape = 'u8[16384]{0}', space=vmem, size = 0x4000, scoped, tag = 'input window, operand 0, single buffered']
    #allocation3 [shape = 's32[1]{0}', space=sflag, size = 0x4, scoped, tag = 'scoped memory for tpu_custom_call.1']
    #allocation4 [shape = 's32[1]{0}', space=sflag, size = 0x4, scoped, tag = 'scoped memory for tpu_custom_call.1']
    #allocation5 [shape = 'u8[196608]{0}', space=vmem, size = 0x30000, scoped, tag = 'input window, operand 1, single buffered']
    #allocation6 [shape = 's32[1]{0}', space=sflag, size = 0x4, scoped, tag = 'scoped memory for tpu_custom_call.1']
    #allocation7 [shape = 'u8[196608]{0}', space=vmem, size = 0x30000, scoped, tag = 'input window, operand 2, single buffered']
    #allocation8 [shape = 'u8[65536]{0}', space=vmem, size = 0x10000, scoped, tag = 'input window, operand 3, single buffered']
    #allocation9 [shape = 's32[1]{0}', space=sflag, size = 0x4, scoped, tag = 'scoped memory for tpu_custom_call.1']
    #allocation10 [shape = 'u8[16384]{0}', space=vmem, size = 0x4000, scoped, tag = 'output window, operand 0, single buffered']
    %10 = vsyncpa [#allocation3], 0
    %11 = vsyncpa [#allocation6], 0
    %12 = vsyncpa [#allocation9], 0
    %13 = vsyncpa [#allocation4], 0
    // Predicated region
    $region2: #{tpu_custom_call.1} parent=1 // pred_check
      _
    $region3: #{tpu_custom_call.1} parent=1 // pred_check_branch
      %15 = sbr.rel (0) target = $region5
    $region4: #{tpu_custom_call.1} parent=1 // pred_region
      %s17 = ssub.s32 512, 512
      %18 = vsyncadd [#allocation3], %s17
      %s19 = sshll.u32 [#allocation2], 4
      %s20 = int_to_ptr.vmem [resolvable:$true] %s19
      %25 = dma.hbm_to_vmem [thread:$0]  %s0, 512, %s20, [#allocation3], 128, 128, 8
    $region5: #{tpu_custom_call.1} parent=1 // pred_fallthru
      _
    // Predicated region
    $region6: #{tpu_custom_call.1} parent=1 // pred_check
      _
    $region7: #{tpu_custom_call.1} parent=1 // pred_check_branch
      %27 = sbr.rel (0) target = $region9
    $region8: #{tpu_custom_call.1} parent=1 // pred_region
      %s29 = ssub.s32 6144, 6144
      %30 = vsyncadd [#allocation6], %s29
      %s31 = sshll.u32 [#allocation5], 4
      %s32 = int_to_ptr.vmem [resolvable:$true] %s31
      %37 = dma.hbm_to_vmem [thread:$0]  %s1, 6144, %s32, [#allocation6], 128, 128, 8
    $region9: #{tpu_custom_call.1} parent=1 // pred_fallthru
      _
    // Predicated region
    $region10: #{tpu_custom_call.1} parent=1 // pred_check
      _
    $region11: #{tpu_custom_call.1} parent=1 // pred_check_branch
      %39 = sbr.rel (0) target = $region13
    $region12: #{tpu_custom_call.1} parent=1 // pred_region
      %s41 = ssub.s32 6144, 6144
      %42 = vsyncadd [#allocation6], %s41
      %s43 = sshll.u32 [#allocation7], 4
      %s44 = int_to_ptr.vmem [resolvable:$true] %s43
      %49 = dma.hbm_to_vmem [thread:$0]  %s2, 6144, %s44, [#allocation6], 128, 128, 8
    $region13: #{tpu_custom_call.1} parent=1 // pred_fallthru
      _
    // Predicated region
    $region14: #{tpu_custom_call.1} parent=1 // pred_check
      _
    $region15: #{tpu_custom_call.1} parent=1 // pred_check_branch
      %51 = sbr.rel (0) target = $region17
    $region16: #{tpu_custom_call.1} parent=1 // pred_region
      %s53 = ssub.s32 2048, 2048
      %54 = vsyncadd [#allocation9], %s53
      %s55 = sshll.u32 [#allocation8], 4
      %s56 = int_to_ptr.vmem [resolvable:$true] %s55
      %61 = dma.hbm_to_vmem [thread:$0]  %s3, 2048, %s56, [#allocation9], 128, 128, 8
    $region17: #{tpu_custom_call.1} parent=1 // pred_fallthru
      _
    // Predicated region
    $region18: #{tpu_custom_call.1} parent=1 // pred_check
      _
    $region19: #{tpu_custom_call.1} parent=1 // pred_check_branch
      %63 = sbr.rel (0) target = $region21
    $region20: #{tpu_custom_call.1} parent=1 // pred_region
      _
    $region21: #{tpu_custom_call.1} parent=1 // pred_fallthru
      _
    // Predicated region
    $region22: #{tpu_custom_call.1} parent=1 // pred_check
      _
    $region23: #{tpu_custom_call.1} parent=1 // pred_check_branch
      %65 = sbr.rel (0) target = $region25
    $region24: #{tpu_custom_call.1} parent=1 // pred_region
      %66 = dma.done [#allocation3], 512
    $region25: #{tpu_custom_call.1} parent=1 // pred_fallthru
      _
    // Predicated region
    $region26: #{tpu_custom_call.1} parent=1 // pred_check
      _
    $region27: #{tpu_custom_call.1} parent=1 // pred_check_branch
      %68 = sbr.rel (0) target = $region29
    $region28: #{tpu_custom_call.1} parent=1 // pred_region
      %69 = dma.done [#allocation6], 6144
    $region29: #{tpu_custom_call.1} parent=1 // pred_fallthru
      _
    // Predicated region
    $region30: #{tpu_custom_call.1} parent=1 // pred_check
      _
    $region31: #{tpu_custom_call.1} parent=1 // pred_check_branch
      %71 = sbr.rel (0) target = $region33
    $region32: #{tpu_custom_call.1} parent=1 // pred_region
      %72 = dma.done [#allocation6], 6144
    $region33: #{tpu_custom_call.1} parent=1 // pred_fallthru
      _
    // Predicated region
    $region34: #{tpu_custom_call.1} parent=1 // pred_check
      _
    $region35: #{tpu_custom_call.1} parent=1 // pred_check_branch
      %74 = sbr.rel (0) target = $region37
    $region36: #{tpu_custom_call.1} parent=1 // pred_region
      %75 = dma.done [#allocation9], 2048
    $region37: #{tpu_custom_call.1} parent=1 // pred_fallthru
      _
    %v76 = vld [vmem:[#allocation2] sm:$0xff]
    %v77 = vld [vmem:[#allocation2 + $0x8] sm:$0xff]
    %v78 = vld [vmem:[#allocation2 + $0x10] sm:$0xff]
    %v79 = vld [vmem:[#allocation2 + $0x18] sm:$0xff]
    %vm82 = vcmask 1040384
    %v83 = vrot.slane %v76, 7
    %v84 = vrot.slane %v77, 7
    %v85 = vsel %vm82, %v83, %v84
    %v88 = vsel %vm82, 0.0, %v83
    %vm89 = vcmask 1046528
    %v90 = vrot.slane %v76, 1
    %v91 = vrot.slane %v77, 1
    %v92 = vsel %vm89, %v90, %v91
    %v95 = vsel %vm89, %v91, 0.0
    %v98 = vrot.slane %v78, 7
    %v99 = vrot.slane %v79, 7
    %v100 = vsel %vm82, %v98, %v99
    %v103 = vsel %vm82, 0.0, %v98
    %v104 = vrot.slane %v78, 1
    %v105 = vrot.slane %v79, 1
    %v106 = vsel %vm89, %v104, %v105
    %v109 = vsel %vm89, %v105, 0.0
    %v110 = vld [vmem:[#allocation5] sm:$0xff]
    %v111 = vld [vmem:[#allocation5 + $0x8] sm:$0xff]
    %v112 = vld [vmem:[#allocation5 + $0x10] sm:$0xff]
    %v113 = vld [vmem:[#allocation5 + $0x18] sm:$0xff]
    %v114 = vld [vmem:[#allocation5 + $0x20] sm:$0xff]
    %v115 = vld [vmem:[#allocation5 + $0x28] sm:$0xff]
    %v116 = vld [vmem:[#allocation5 + $0x30] sm:$0xff]
    %v117 = vld [vmem:[#allocation5 + $0x38] sm:$0xff]
    %v118 = vld [vmem:[#allocation5 + $0x40] sm:$0xff]
    %v119 = vld [vmem:[#allocation5 + $0x48] sm:$0xff]
    %v120 = vld [vmem:[#allocation5 + $0x50] sm:$0xff]
    %v121 = vld [vmem:[#allocation5 + $0x58] sm:$0xff]
    %v122 = vld [vmem:[#allocation5 + $0x60] sm:$0xff]
    %v123 = vld [vmem:[#allocation5 + $0x68] sm:$0xff]
    %v124 = vld [vmem:[#allocation5 + $0x70] sm:$0xff]
    %v125 = vld [vmem:[#allocation5 + $0x78] sm:$0xff]
    %v126 = vld [vmem:[#allocation5 + $0x80] sm:$0xff]
    %v127 = vld [vmem:[#allocation5 + $0x88] sm:$0xff]
    %v128 = vld [vmem:[#allocation5 + $0x90] sm:$0xff]
    %v129 = vld [vmem:[#allocation5 + $0x98] sm:$0xff]
    %v130 = vld [vmem:[#allocation5 + $0xa0] sm:$0xff]
    %v131 = vld [vmem:[#allocation5 + $0xa8] sm:$0xff]
    %v132 = vld [vmem:[#allocation5 + $0xb0] sm:$0xff]
    %v133 = vld [vmem:[#allocation5 + $0xb8] sm:$0xff]
    %v134 = vld [vmem:[#allocation5 + $0xc0] sm:$0xff]
    %v135 = vld [vmem:[#allocation5 + $0xc8] sm:$0xff]
    %v136 = vld [vmem:[#allocation5 + $0xd0] sm:$0xff]
    %v137 = vld [vmem:[#allocation5 + $0xd8] sm:$0xff]
    %v138 = vld [vmem:[#allocation5 + $0xe0] sm:$0xff]
    %v139 = vld [vmem:[#allocation5 + $0xe8] sm:$0xff]
    %v140 = vld [vmem:[#allocation5 + $0xf0] sm:$0xff]
    %v141 = vld [vmem:[#allocation5 + $0xf8] sm:$0xff]
    %v142 = vld [vmem:[#allocation5 + $0x100] sm:$0xff]
    %v143 = vld [vmem:[#allocation5 + $0x108] sm:$0xff]
    %v144 = vld [vmem:[#allocation5 + $0x110] sm:$0xff]
    %v145 = vld [vmem:[#allocation5 + $0x118] sm:$0xff]
    %v146 = vld [vmem:[#allocation5 + $0x120] sm:$0xff]
    %v147 = vld [vmem:[#allocation5 + $0x128] sm:$0xff]
    %v148 = vld [vmem:[#allocation5 + $0x130] sm:$0xff]
    %v149 = vld [vmem:[#allocation5 + $0x138] sm:$0xff]
    %v150 = vld [vmem:[#allocation5 + $0x140] sm:$0xff]
    %v151 = vld [vmem:[#allocation5 + $0x148] sm:$0xff]
    %v152 = vld [vmem:[#allocation5 + $0x150] sm:$0xff]
    %v153 = vld [vmem:[#allocation5 + $0x158] sm:$0xff]
    %v154 = vld [vmem:[#allocation5 + $0x160] sm:$0xff]
    %v155 = vld [vmem:[#allocation5 + $0x168] sm:$0xff]
    %v156 = vld [vmem:[#allocation5 + $0x170] sm:$0xff]
    %v157 = vld [vmem:[#allocation5 + $0x178] sm:$0xff]
    %158 = vmatprep.subr.mxu0 0.0
    %159 = vmatpush1.msra.mxu0 %v110
    %160 = vmatprep.subr.mxu0 0.0
    %161 = vmatpush1.msra.mxu0 %v111
    %162 = vmatprep.subr.mxu0 0.0
    %163 = vmatpush1.msra.mxu0 %v112
    %164 = vmatprep.subr.mxu0 0.0
    %165 = vmatpush1.msra.mxu0 %v113
    %166 = vmatprep.subr.mxu0 0.0
    %167 = vmatpush1.msra.mxu0 %v114
    %168 = vmatprep.subr.mxu0 0.0
    %169 = vmatpush1.msra.mxu0 %v115
    %170 = vmatprep.subr.mxu0 0.0
    %171 = vmatpush1.msra.mxu0 %v116
    %172 = vmatprep.subr.mxu0 0.0
    %173 = vmatpush1.msra.mxu0 %v117
    %174 = vmatprep.subr.mxu0 0.0
    %175 = vmatpush1.msra.mxu0 %v118
    %176 = vmatprep.subr.mxu0 0.0
    %177 = vmatpush1.msra.mxu0 %v119
    %178 = vmatprep.subr.mxu0 0.0
    %179 = vmatpush1.msra.mxu0 %v120
    %180 = vmatprep.subr.mxu0 0.0
    %181 = vmatpush1.msra.mxu0 %v121
    %182 = vmatprep.subr.mxu0 0.0
    %183 = vmatpush1.msra.mxu0 %v122
    %184 = vmatprep.subr.mxu0 0.0
    %185 = vmatpush1.msra.mxu0 %v123
    %186 = vmatprep.subr.mxu0 0.0
    %187 = vmatpush1.msra.mxu0 %v124
    %188 = vmatprep.subr.mxu0 0.0
    %189 = vmatpush1.msra.mxu0 %v125
    %190 = vmatprep.subr.mxu0 0.0
    %191 = vmatpush1.msra.mxu0 %v126
    %192 = vmatprep.subr.mxu0 0.0
    %193 = vmatpush1.msra.mxu0 %v127
    %194 = vmatprep.subr.mxu0 0.0
    %195 = vmatpush1.msra.mxu0 %v128
    %196 = vmatprep.subr.mxu0 0.0
    %197 = vmatpush1.msra.mxu0 %v129
    %198 = vmatprep.subr.mxu0 0.0
    %199 = vmatpush1.msra.mxu0 %v130
    %200 = vmatprep.subr.mxu0 0.0
    %201 = vmatpush1.msra.mxu0 %v131
    %202 = vmatprep.subr.mxu0 0.0
    %203 = vmatpush1.msra.mxu0 %v132
    %204 = vmatprep.subr.mxu0 0.0
    %205 = vmatpush1.msra.mxu0 %v133
    %206 = vmatprep.subr.mxu0 0.0
    %207 = vmatpush1.msra.mxu0 %v134
    %208 = vmatprep.subr.mxu0 0.0
    %209 = vmatpush1.msra.mxu0 %v135
    %210 = vmatprep.subr.mxu0 0.0
    %211 = vmatpush1.msra.mxu0 %v136
    %212 = vmatprep.subr.mxu0 0.0
    %213 = vmatpush1.msra.mxu0 %v137
    %214 = vmatprep.subr.mxu0 0.0
    %215 = vmatpush1.msra.mxu0 %v138
    %216 = vmatprep.subr.mxu0 0.0
    %217 = vmatpush1.msra.mxu0 %v139
    %218 = vmatprep.subr.mxu0 0.0
    %219 = vmatpush1.msra.mxu0 %v140
    %220 = vmatprep.subr.mxu0 0.0
    %221 = vmatpush1.msra.mxu0 %v141
    %222 = vmatprep.mubr.f32.mxu0 %v76
    %223 = vmatmul.mubr.f32.gmra.mrb[0].mxu0 %v88
    %v224 = vpop.f32.mrb[0].mxu0
    %v225 = vadd.f32 0.0, %v224
    %v226 = vpop.f32.mrb[0].mxu0
    %227 = vmatprep.mubr.f32.mxu0 %v77
    %228 = vmatmul.mubr.f32.gmra.mrb[0].mxu0 %v85
    %v229 = vpop.f32.mrb[0].mxu0
    %v230 = vadd.f32 0.0, %v229
    %v231 = vpop.f32.mrb[0].mxu0
    %232 = vmatprep.mubr.f32.mxu0 %v78
    %233 = vmatmul.mubr.f32.gmra.mrb[0].mxu0 %v103
    %v234 = vpop.f32.mrb[0].mxu0
    %v235 = vadd.f32 0.0, %v234
    %v236 = vpop.f32.mrb[0].mxu0
    %237 = vmatprep.mubr.f32.mxu0 %v79
    %238 = vmatmul.mubr.f32.gmra.mrb[0].mxu0 %v100
    %v239 = vpop.f32.mrb[0].mxu0
    %v240 = vadd.f32 0.0, %v239
    %v241 = vpop.f32.mrb[0].mxu0
    %242 = vdwg.mxu0
    %243 = vmatprep.subr.mxu0 0.0
    %244 = vmatpush1.msra.mxu0 %v142
    %245 = vmatprep.subr.mxu0 0.0
    %246 = vmatpush1.msra.mxu0 %v143
    %247 = vmatprep.subr.mxu0 0.0
    %248 = vmatpush1.msra.mxu0 %v144
    %249 = vmatprep.subr.mxu0 0.0
    %250 = vmatpush1.msra.mxu0 %v145
    %251 = vmatprep.subr.mxu0 0.0
    %252 = vmatpush1.msra.mxu0 %v146
    %253 = vmatprep.subr.mxu0 0.0
    %254 = vmatpush1.msra.mxu0 %v147
    %255 = vmatprep.subr.mxu0 0.0
    %256 = vmatpush1.msra.mxu0 %v148
    %257 = vmatprep.subr.mxu0 0.0
    %258 = vmatpush1.msra.mxu0 %v149
    %259 = vmatprep.subr.mxu0 0.0
    %260 = vmatpush1.msra.mxu0 %v150
    %261 = vmatprep.subr.mxu0 0.0
    %262 = vmatpush1.msra.mxu0 %v151
    %263 = vmatprep.subr.mxu0 0.0
    %264 = vmatpush1.msra.mxu0 %v152
    %265 = vmatprep.subr.mxu0 0.0
    %266 = vmatpush1.msra.mxu0 %v153
    %267 = vmatprep.subr.mxu0 0.0
    %268 = vmatpush1.msra.mxu0 %v154
    %269 = vmatprep.subr.mxu0 0.0
    %270 = vmatpush1.msra.mxu0 %v155
    %271 = vmatprep.subr.mxu0 0.0
    %272 = vmatpush1.msra.mxu0 %v156
    %273 = vmatprep.subr.mxu0 0.0
    %274 = vmatpush1.msra.mxu0 %v157
    %275 = vmatprep.subr.mxu0 0.0
    %276 = vmatpush1.msra.mxu0 0.0
    %277 = vmatprep.subr.mxu0 0.0
    %278 = vmatpush1.msra.mxu0 0.0
    %279 = vmatprep.subr.mxu0 0.0
    %280 = vmatpush1.msra.mxu0 0.0
    %281 = vmatprep.subr.mxu0 0.0
    %282 = vmatpush1.msra.mxu0 0.0
    %283 = vmatprep.subr.mxu0 0.0
    %284 = vmatpush1.msra.mxu0 0.0
    %285 = vmatprep.subr.mxu0 0.0
    %286 = vmatpush1.msra.mxu0 0.0
    %287 = vmatprep.subr.mxu0 0.0
    %288 = vmatpush1.msra.mxu0 0.0
    %289 = vmatprep.subr.mxu0 0.0
    %290 = vmatpush1.msra.mxu0 0.0
    %291 = vmatprep.subr.mxu0 0.0
    %292 = vmatpush1.msra.mxu0 0.0
    %293 = vmatprep.subr.mxu0 0.0
    %294 = vmatpush1.msra.mxu0 0.0
    %295 = vmatprep.subr.mxu0 0.0
    %296 = vmatpush1.msra.mxu0 0.0
    %297 = vmatprep.subr.mxu0 0.0
    %298 = vmatpush1.msra.mxu0 0.0
    %299 = vmatprep.subr.mxu0 0.0
    %300 = vmatpush1.msra.mxu0 0.0
    %301 = vmatprep.subr.mxu0 0.0
    %302 = vmatpush1.msra.mxu0 0.0
    %303 = vmatprep.subr.mxu0 0.0
    %304 = vmatpush1.msra.mxu0 0.0
    %305 = vmatprep.subr.mxu0 0.0
    %306 = vmatpush1.msra.mxu0 0.0
    %307 = vmatprep.mubr.f32.mxu0 0.0
    %308 = vmatmul.mubr.f32.gmra.mrb[0].mxu0 %v92
    %v309 = vpop.f32.mrb[0].mxu0
    %v310 = vadd.f32 %v225, %v309
    %v311 = vpop.f32.mrb[0].mxu0
    %312 = vmatprep.mubr.f32.mxu0 0.0
    %313 = vmatmul.mubr.f32.gmra.mrb[0].mxu0 %v95
    %v314 = vpop.f32.mrb[0].mxu0
    %v315 = vadd.f32 %v230, %v314
    %v316 = vpop.f32.mrb[0].mxu0
    %317 = vmatprep.mubr.f32.mxu0 0.0
    %318 = vmatmul.mubr.f32.gmra.mrb[0].mxu0 %v106
    %v319 = vpop.f32.mrb[0].mxu0
    %v320 = vadd.f32 %v235, %v319
    %v321 = vpop.f32.mrb[0].mxu0
    %322 = vmatprep.mubr.f32.mxu0 0.0
    %323 = vmatmul.mubr.f32.gmra.mrb[0].mxu0 %v109
    %v324 = vpop.f32.mrb[0].mxu0
    %v325 = vadd.f32 %v240, %v324
    %v326 = vpop.f32.mrb[0].mxu0
    %327 = vdwg.mxu0
    %v328 = vld [vmem:[%s4] sm:$0x1]
    %v329 = vld [vmem:[%s4 + $0x1] sm:$0x1]
    %v330 = vld [vmem:[#allocation8] sm:$0xff]
    %v331 = vld [vmem:[#allocation8 + $0x8] sm:$0xff]
    %v332 = vld [vmem:[#allocation8 + $0x10] sm:$0xff]
    %v333 = vld [vmem:[#allocation8 + $0x18] sm:$0xff]
    %v334 = vld [vmem:[#allocation8 + $0x20] sm:$0xff]
    %v335 = vld [vmem:[#allocation8 + $0x28] sm:$0xff]
    %v336 = vld [vmem:[#allocation8 + $0x30] sm:$0xff]
    %v337 = vld [vmem:[#allocation8 + $0x38] sm:$0xff]
    %v338 = vld [vmem:[#allocation8 + $0x40] sm:$0xff]
    %v339 = vld [vmem:[#allocation8 + $0x48] sm:$0xff]
    %v340 = vld [vmem:[#allocation8 + $0x50] sm:$0xff]
    %v341 = vld [vmem:[#allocation8 + $0x58] sm:$0xff]
    %v342 = vld [vmem:[#allocation8 + $0x60] sm:$0xff]
    %v343 = vld [vmem:[#allocation8 + $0x68] sm:$0xff]
    %v344 = vld [vmem:[#allocation8 + $0x70] sm:$0xff]
    %v345 = vld [vmem:[#allocation8 + $0x78] sm:$0xff]
    %v346 = vadd.f32 %v310, %v315
    %v347 = vadd.f32 %v346, %v320
    %v348 = vadd.f32 %v347, %v325
    %v349 = vrot.slane %v348, 4
    %v350 = vadd.f32 %v348, %v349
    %v351 = vrot.slane %v350, 2
    %v352 = vadd.f32 %v350, %v351
    %v353 = vrot.slane %v352, 1
    %v354 = vadd.f32 %v352, %v353
    %355 = vmatprep.subr.mxu0 0.0
    %356 = vmatpush1.msra.mxu0 %v330
    %357 = vmatprep.subr.mxu0 0.0
    %358 = vmatpush1.msra.mxu0 %v331
    %359 = vmatprep.subr.mxu0 0.0
    %360 = vmatpush1.msra.mxu0 %v332
    %361 = vmatprep.subr.mxu0 0.0
    %362 = vmatpush1.msra.mxu0 %v333
    %363 = vmatprep.subr.mxu0 0.0
    %364 = vmatpush1.msra.mxu0 %v334
    %365 = vmatprep.subr.mxu0 0.0
    %366 = vmatpush1.msra.mxu0 %v335
    %367 = vmatprep.subr.mxu0 0.0
    %368 = vmatpush1.msra.mxu0 %v336
    %369 = vmatprep.subr.mxu0 0.0
    %370 = vmatpush1.msra.mxu0 %v337
    %371 = vmatprep.subr.mxu0 0.0
    %372 = vmatpush1.msra.mxu0 %v338
    %373 = vmatprep.subr.mxu0 0.0
    %374 = vmatpush1.msra.mxu0 %v339
    %375 = vmatprep.subr.mxu0 0.0
    %376 = vmatpush1.msra.mxu0 %v340
    %377 = vmatprep.subr.mxu0 0.0
    %378 = vmatpush1.msra.mxu0 %v341
    %379 = vmatprep.subr.mxu0 0.0
    %380 = vmatpush1.msra.mxu0 %v342
    %381 = vmatprep.subr.mxu0 0.0
    %382 = vmatpush1.msra.mxu0 %v343
    %383 = vmatprep.subr.mxu0 0.0
    %384 = vmatpush1.msra.mxu0 %v344
    %385 = vmatprep.subr.mxu0 0.0
    %386 = vmatpush1.msra.mxu0 %v345
    %387 = vmatprep.subr.mxu0 0.0
    %388 = vmatpush1.msra.mxu0 0.0
    %389 = vmatprep.subr.mxu0 0.0
    %390 = vmatpush1.msra.mxu0 0.0
    %391 = vmatprep.subr.mxu0 0.0
    %392 = vmatpush1.msra.mxu0 0.0
    %393 = vmatprep.subr.mxu0 0.0
    %394 = vmatpush1.msra.mxu0 0.0
    %395 = vmatprep.subr.mxu0 0.0
    %396 = vmatpush1.msra.mxu0 0.0
    %397 = vmatprep.subr.mxu0 0.0
    %398 = vmatpush1.msra.mxu0 0.0
    %399 = vmatprep.subr.mxu0 0.0
    %400 = vmatpush1.msra.mxu0 0.0
    %401 = vmatprep.subr.mxu0 0.0
    %402 = vmatpush1.msra.mxu0 0.0
    %403 = vmatprep.subr.mxu0 0.0
    %404 = vmatpush1.msra.mxu0 0.0
    %405 = vmatprep.subr.mxu0 0.0
    %406 = vmatpush1.msra.mxu0 0.0
    %407 = vmatprep.subr.mxu0 0.0
    %408 = vmatpush1.msra.mxu0 0.0
    %409 = vmatprep.subr.mxu0 0.0
    %410 = vmatpush1.msra.mxu0 0.0
    %411 = vmatprep.subr.mxu0 0.0
    %412 = vmatpush1.msra.mxu0 0.0
    %413 = vmatprep.subr.mxu0 0.0
    %414 = vmatpush1.msra.mxu0 0.0
    %415 = vmatprep.subr.mxu0 0.0
    %416 = vmatpush1.msra.mxu0 0.0
    %417 = vmatprep.subr.mxu0 0.0
    %418 = vmatpush1.msra.mxu0 0.0
    %419 = vmatprep.mubr.f32.mxu0 0.0
    %420 = vmatmul.mubr.f32.gmra.mrb[0].mxu0 %v354
    %v421 = vpop.f32.mrb[0].mxu0
    %v422 = vadd.f32 0.0, %v421
    %v423 = vpop.f32.mrb[0].mxu0
    %424 = vdwg.mxu0
    %v425 = vmul.f32 %v422, 0.001953125
    %v426 = vlaneseq
    %v427 = vshrl.u32 %v426, 7
    %v428 = vsub.s32 0, %v427
    %v429 = vrot.slane %v425, %v428
    %v430 = vsub.f32 %v310, %v429
    %v431 = vsub.f32 %v315, %v429
    %v432 = vsub.f32 %v320, %v429
    %v433 = vsub.f32 %v325, %v429
    %v434 = vmul.f32 %v430, %v430
    %v435 = vmul.f32 %v431, %v431
    %v436 = vmul.f32 %v432, %v432
    %v437 = vmul.f32 %v433, %v433
    %v438 = vadd.f32 %v434, %v435
    %v439 = vadd.f32 %v438, %v436
    %v440 = vadd.f32 %v439, %v437
    %v441 = vrot.slane %v440, 4
    %v442 = vadd.f32 %v440, %v441
    %v443 = vrot.slane %v442, 2
    %v444 = vadd.f32 %v442, %v443
    %v445 = vrot.slane %v444, 1
    %v446 = vadd.f32 %v444, %v445
    %447 = vmatprep.subr.mxu0 0.0
    %448 = vmatpush1.msra.mxu0 %v330
    %449 = vmatprep.subr.mxu0 0.0
    %450 = vmatpush1.msra.mxu0 %v331
    %451 = vmatprep.subr.mxu0 0.0
    %452 = vmatpush1.msra.mxu0 %v332
    %453 = vmatprep.subr.mxu0 0.0
    %454 = vmatpush1.msra.mxu0 %v333
    %455 = vmatprep.subr.mxu0 0.0
    %456 = vmatpush1.msra.mxu0 %v334
    %457 = vmatprep.subr.mxu0 0.0
    %458 = vmatpush1.msra.mxu0 %v335
    %459 = vmatprep.subr.mxu0 0.0
    %460 = vmatpush1.msra.mxu0 %v336
    %461 = vmatprep.subr.mxu0 0.0
    %462 = vmatpush1.msra.mxu0 %v337
    %463 = vmatprep.subr.mxu0 0.0
    %464 = vmatpush1.msra.mxu0 %v338
    %465 = vmatprep.subr.mxu0 0.0
    %466 = vmatpush1.msra.mxu0 %v339
    %467 = vmatprep.subr.mxu0 0.0
    %468 = vmatpush1.msra.mxu0 %v340
    %469 = vmatprep.subr.mxu0 0.0
    %470 = vmatpush1.msra.mxu0 %v341
    %471 = vmatprep.subr.mxu0 0.0
    %472 = vmatpush1.msra.mxu0 %v342
    %473 = vmatprep.subr.mxu0 0.0
    %474 = vmatpush1.msra.mxu0 %v343
    %475 = vmatprep.subr.mxu0 0.0
    %476 = vmatpush1.msra.mxu0 %v344
    %477 = vmatprep.subr.mxu0 0.0
    %478 = vmatpush1.msra.mxu0 %v345
    %479 = vmatprep.subr.mxu0 0.0
    %480 = vmatpush1.msra.mxu0 0.0
    %481 = vmatprep.subr.mxu0 0.0
    %482 = vmatpush1.msra.mxu0 0.0
    %483 = vmatprep.subr.mxu0 0.0
    %484 = vmatpush1.msra.mxu0 0.0
    %485 = vmatprep.subr.mxu0 0.0
    %486 = vmatpush1.msra.mxu0 0.0
    %487 = vmatprep.subr.mxu0 0.0
    %488 = vmatpush1.msra.mxu0 0.0
    %489 = vmatprep.subr.mxu0 0.0
    %490 = vmatpush1.msra.mxu0 0.0
    %491 = vmatprep.subr.mxu0 0.0
    %492 = vmatpush1.msra.mxu0 0.0
    %493 = vmatprep.subr.mxu0 0.0
    %494 = vmatpush1.msra.mxu0 0.0
    %495 = vmatprep.subr.mxu0 0.0
    %496 = vmatpush1.msra.mxu0 0.0
    %497 = vmatprep.subr.mxu0 0.0
    %498 = vmatpush1.msra.mxu0 0.0
    %499 = vmatprep.subr.mxu0 0.0
    %500 = vmatpush1.msra.mxu0 0.0
    %501 = vmatprep.subr.mxu0 0.0
    %502 = vmatpush1.msra.mxu0 0.0
    %503 = vmatprep.subr.mxu0 0.0
    %504 = vmatpush1.msra.mxu0 0.0
    %505 = vmatprep.subr.mxu0 0.0
    %506 = vmatpush1.msra.mxu0 0.0
    %507 = vmatprep.subr.mxu0 0.0
    %508 = vmatpush1.msra.mxu0 0.0
    %509 = vmatprep.subr.mxu0 0.0
    %510 = vmatpush1.msra.mxu0 0.0
    %511 = vmatprep.mubr.f32.mxu0 0.0
    %512 = vmatmul.mubr.f32.gmra.mrb[0].mxu0 %v446
    %v513 = vpop.f32.mrb[0].mxu0
    %v514 = vadd.f32 0.0, %v513
    %v515 = vpop.f32.mrb[0].mxu0
    %516 = vdwg.mxu0
    %v517 = vmul.f32 %v514, 0.001953125
    %v518 = vadd.f32 %v517, 1e-05
    %v519 = vrsqrt.pop %v518
    %v520 = vmul.f32 %v328, %v519
    %v521 = vmul.f32 %v425, %v520
    %v522 = vsub.f32 %v329, %v521
    %v523 = vlaneseq
    %v524 = vshrl.u32 %v523, 7
    %v525 = vsub.s32 0, %v524
    %v526 = vrot.slane %v520, %v525
    %v527 = vmul.f32 %v310, %v526
    %v528 = vmul.f32 %v315, %v526
    %v529 = vmul.f32 %v320, %v526
    %v530 = vmul.f32 %v325, %v526
    %v531 = vlaneseq
    %v532 = vshrl.u32 %v531, 7
    %v533 = vsub.s32 0, %v532
    %v534 = vrot.slane %v522, %v533
    %v535 = vadd.f32 %v527, %v534
    %v536 = vadd.f32 %v528, %v534
    %v537 = vadd.f32 %v529, %v534
    %v538 = vadd.f32 %v530, %v534
    %v539 = vmax.f32 %v535, 0.0
    %v540 = vmax.f32 %v536, 0.0
    %v541 = vmax.f32 %v537, 0.0
    %v542 = vmax.f32 %v538, 0.0
    %v545 = vrot.slane %v539, 7
    %v546 = vrot.slane %v540, 7
    %v547 = vsel %vm82, %v545, %v546
    %v550 = vsel %vm82, 0.0, %v545
    %v551 = vrot.slane %v539, 1
    %v552 = vrot.slane %v540, 1
    %v553 = vsel %vm89, %v551, %v552
    %v556 = vsel %vm89, %v552, 0.0
    %v559 = vrot.slane %v541, 7
    %v560 = vrot.slane %v542, 7
    %v561 = vsel %vm82, %v559, %v560
    %v564 = vsel %vm82, 0.0, %v559
    %v565 = vrot.slane %v541, 1
    %v566 = vrot.slane %v542, 1
    %v567 = vsel %vm89, %v565, %v566
    %v570 = vsel %vm89, %v566, 0.0
    %v571 = vld [vmem:[#allocation7] sm:$0xff]
    %v572 = vld [vmem:[#allocation7 + $0x8] sm:$0xff]
    %v573 = vld [vmem:[#allocation7 + $0x10] sm:$0xff]
    %v574 = vld [vmem:[#allocation7 + $0x18] sm:$0xff]
    %v575 = vld [vmem:[#allocation7 + $0x20] sm:$0xff]
    %v576 = vld [vmem:[#allocation7 + $0x28] sm:$0xff]
    %v577 = vld [vmem:[#allocation7 + $0x30] sm:$0xff]
    %v578 = vld [vmem:[#allocation7 + $0x38] sm:$0xff]
    %v579 = vld [vmem:[#allocation7 + $0x40] sm:$0xff]
    %v580 = vld [vmem:[#allocation7 + $0x48] sm:$0xff]
    %v581 = vld [vmem:[#allocation7 + $0x50] sm:$0xff]
    %v582 = vld [vmem:[#allocation7 + $0x58] sm:$0xff]
    %v583 = vld [vmem:[#allocation7 + $0x60] sm:$0xff]
    %v584 = vld [vmem:[#allocation7 + $0x68] sm:$0xff]
    %v585 = vld [vmem:[#allocation7 + $0x70] sm:$0xff]
    %v586 = vld [vmem:[#allocation7 + $0x78] sm:$0xff]
    %v587 = vld [vmem:[#allocation7 + $0x80] sm:$0xff]
    %v588 = vld [vmem:[#allocation7 + $0x88] sm:$0xff]
    %v589 = vld [vmem:[#allocation7 + $0x90] sm:$0xff]
    %v590 = vld [vmem:[#allocation7 + $0x98] sm:$0xff]
    %v591 = vld [vmem:[#allocation7 + $0xa0] sm:$0xff]
    %v592 = vld [vmem:[#allocation7 + $0xa8] sm:$0xff]
    %v593 = vld [vmem:[#allocation7 + $0xb0] sm:$0xff]
    %v594 = vld [vmem:[#allocation7 + $0xb8] sm:$0xff]
    %v595 = vld [vmem:[#allocation7 + $0xc0] sm:$0xff]
    %v596 = vld [vmem:[#allocation7 + $0xc8] sm:$0xff]
    %v597 = vld [vmem:[#allocation7 + $0xd0] sm:$0xff]
    %v598 = vld [vmem:[#allocation7 + $0xd8] sm:$0xff]
    %v599 = vld [vmem:[#allocation7 + $0xe0] sm:$0xff]
    %v600 = vld [vmem:[#allocation7 + $0xe8] sm:$0xff]
    %v601 = vld [vmem:[#allocation7 + $0xf0] sm:$0xff]
    %v602 = vld [vmem:[#allocation7 + $0xf8] sm:$0xff]
    %v603 = vld [vmem:[#allocation7 + $0x100] sm:$0xff]
    %v604 = vld [vmem:[#allocation7 + $0x108] sm:$0xff]
    %v605 = vld [vmem:[#allocation7 + $0x110] sm:$0xff]
    %v606 = vld [vmem:[#allocation7 + $0x118] sm:$0xff]
    %v607 = vld [vmem:[#allocation7 + $0x120] sm:$0xff]
    %v608 = vld [vmem:[#allocation7 + $0x128] sm:$0xff]
    %v609 = vld [vmem:[#allocation7 + $0x130] sm:$0xff]
    %v610 = vld [vmem:[#allocation7 + $0x138] sm:$0xff]
    %v611 = vld [vmem:[#allocation7 + $0x140] sm:$0xff]
    %v612 = vld [vmem:[#allocation7 + $0x148] sm:$0xff]
    %v613 = vld [vmem:[#allocation7 + $0x150] sm:$0xff]
    %v614 = vld [vmem:[#allocation7 + $0x158] sm:$0xff]
    %v615 = vld [vmem:[#allocation7 + $0x160] sm:$0xff]
    %v616 = vld [vmem:[#allocation7 + $0x168] sm:$0xff]
    %v617 = vld [vmem:[#allocation7 + $0x170] sm:$0xff]
    %v618 = vld [vmem:[#allocation7 + $0x178] sm:$0xff]
    %619 = vmatprep.subr.mxu0 0.0
    %620 = vmatpush1.msra.mxu0 %v571
    %621 = vmatprep.subr.mxu0 0.0
    %622 = vmatpush1.msra.mxu0 %v572
    %623 = vmatprep.subr.mxu0 0.0
    %624 = vmatpush1.msra.mxu0 %v573
    %625 = vmatprep.subr.mxu0 0.0
    %626 = vmatpush1.msra.mxu0 %v574
    %627 = vmatprep.subr.mxu0 0.0
    %628 = vmatpush1.msra.mxu0 %v575
    %629 = vmatprep.subr.mxu0 0.0
    %630 = vmatpush1.msra.mxu0 %v576
    %631 = vmatprep.subr.mxu0 0.0
    %632 = vmatpush1.msra.mxu0 %v577
    %633 = vmatprep.subr.mxu0 0.0
    %634 = vmatpush1.msra.mxu0 %v578
    %635 = vmatprep.subr.mxu0 0.0
    %636 = vmatpush1.msra.mxu0 %v579
    %637 = vmatprep.subr.mxu0 0.0
    %638 = vmatpush1.msra.mxu0 %v580
    %639 = vmatprep.subr.mxu0 0.0
    %640 = vmatpush1.msra.mxu0 %v581
    %641 = vmatprep.subr.mxu0 0.0
    %642 = vmatpush1.msra.mxu0 %v582
    %643 = vmatprep.subr.mxu0 0.0
    %644 = vmatpush1.msra.mxu0 %v583
    %645 = vmatprep.subr.mxu0 0.0
    %646 = vmatpush1.msra.mxu0 %v584
    %647 = vmatprep.subr.mxu0 0.0
    %648 = vmatpush1.msra.mxu0 %v585
    %649 = vmatprep.subr.mxu0 0.0
    %650 = vmatpush1.msra.mxu0 %v586
    %651 = vmatprep.subr.mxu0 0.0
    %652 = vmatpush1.msra.mxu0 %v587
    %653 = vmatprep.subr.mxu0 0.0
    %654 = vmatpush1.msra.mxu0 %v588
    %655 = vmatprep.subr.mxu0 0.0
    %656 = vmatpush1.msra.mxu0 %v589
    %657 = vmatprep.subr.mxu0 0.0
    %658 = vmatpush1.msra.mxu0 %v590
    %659 = vmatprep.subr.mxu0 0.0
    %660 = vmatpush1.msra.mxu0 %v591
    %661 = vmatprep.subr.mxu0 0.0
    %662 = vmatpush1.msra.mxu0 %v592
    %663 = vmatprep.subr.mxu0 0.0
    %664 = vmatpush1.msra.mxu0 %v593
    %665 = vmatprep.subr.mxu0 0.0
    %666 = vmatpush1.msra.mxu0 %v594
    %667 = vmatprep.subr.mxu0 0.0
    %668 = vmatpush1.msra.mxu0 %v595
    %669 = vmatprep.subr.mxu0 0.0
    %670 = vmatpush1.msra.mxu0 %v596
    %671 = vmatprep.subr.mxu0 0.0
    %672 = vmatpush1.msra.mxu0 %v597
    %673 = vmatprep.subr.mxu0 0.0
    %674 = vmatpush1.msra.mxu0 %v598
    %675 = vmatprep.subr.mxu0 0.0
    %676 = vmatpush1.msra.mxu0 %v599
    %677 = vmatprep.subr.mxu0 0.0
    %678 = vmatpush1.msra.mxu0 %v600
    %679 = vmatprep.subr.mxu0 0.0
    %680 = vmatpush1.msra.mxu0 %v601
    %681 = vmatprep.subr.mxu0 0.0
    %682 = vmatpush1.msra.mxu0 %v602
    %683 = vmatprep.mubr.f32.mxu0 %v539
    %684 = vmatmul.mubr.f32.gmra.mrb[0].mxu0 %v550
    %v685 = vpop.f32.mrb[0].mxu0
    %v686 = vadd.f32 0.0, %v685
    %v687 = vpop.f32.mrb[0].mxu0
    %688 = vmatprep.mubr.f32.mxu0 %v540
    %689 = vmatmul.mubr.f32.gmra.mrb[0].mxu0 %v547
    %v690 = vpop.f32.mrb[0].mxu0
    %v691 = vadd.f32 0.0, %v690
    %v692 = vpop.f32.mrb[0].mxu0
    %693 = vmatprep.mubr.f32.mxu0 %v541
    %694 = vmatmul.mubr.f32.gmra.mrb[0].mxu0 %v564
    %v695 = vpop.f32.mrb[0].mxu0
    %v696 = vadd.f32 0.0, %v695
    %v697 = vpop.f32.mrb[0].mxu0
    %698 = vmatprep.mubr.f32.mxu0 %v542
    %699 = vmatmul.mubr.f32.gmra.mrb[0].mxu0 %v561
    %v700 = vpop.f32.mrb[0].mxu0
    %v701 = vadd.f32 0.0, %v700
    %v702 = vpop.f32.mrb[0].mxu0
    %703 = vdwg.mxu0
    %704 = vmatprep.subr.mxu0 0.0
    %705 = vmatpush1.msra.mxu0 %v603
    %706 = vmatprep.subr.mxu0 0.0
    %707 = vmatpush1.msra.mxu0 %v604
    %708 = vmatprep.subr.mxu0 0.0
    %709 = vmatpush1.msra.mxu0 %v605
    %710 = vmatprep.subr.mxu0 0.0
    %711 = vmatpush1.msra.mxu0 %v606
    %712 = vmatprep.subr.mxu0 0.0
    %713 = vmatpush1.msra.mxu0 %v607
    %714 = vmatprep.subr.mxu0 0.0
    %715 = vmatpush1.msra.mxu0 %v608
    %716 = vmatprep.subr.mxu0 0.0
    %717 = vmatpush1.msra.mxu0 %v609
    %718 = vmatprep.subr.mxu0 0.0
    %719 = vmatpush1.msra.mxu0 %v610
    %720 = vmatprep.subr.mxu0 0.0
    %721 = vmatpush1.msra.mxu0 %v611
    %722 = vmatprep.subr.mxu0 0.0
    %723 = vmatpush1.msra.mxu0 %v612
    %724 = vmatprep.subr.mxu0 0.0
    %725 = vmatpush1.msra.mxu0 %v613
    %726 = vmatprep.subr.mxu0 0.0
    %727 = vmatpush1.msra.mxu0 %v614
    %728 = vmatprep.subr.mxu0 0.0
    %729 = vmatpush1.msra.mxu0 %v615
    %730 = vmatprep.subr.mxu0 0.0
    %731 = vmatpush1.msra.mxu0 %v616
    %732 = vmatprep.subr.mxu0 0.0
    %733 = vmatpush1.msra.mxu0 %v617
    %734 = vmatprep.subr.mxu0 0.0
    %735 = vmatpush1.msra.mxu0 %v618
    %736 = vmatprep.subr.mxu0 0.0
    %737 = vmatpush1.msra.mxu0 0.0
    %738 = vmatprep.subr.mxu0 0.0
    %739 = vmatpush1.msra.mxu0 0.0
    %740 = vmatprep.subr.mxu0 0.0
    %741 = vmatpush1.msra.mxu0 0.0
    %742 = vmatprep.subr.mxu0 0.0
    %743 = vmatpush1.msra.mxu0 0.0
    %744 = vmatprep.subr.mxu0 0.0
    %745 = vmatpush1.msra.mxu0 0.0
    %746 = vmatprep.subr.mxu0 0.0
    %747 = vmatpush1.msra.mxu0 0.0
    %748 = vmatprep.subr.mxu0 0.0
    %749 = vmatpush1.msra.mxu0 0.0
    %750 = vmatprep.subr.mxu0 0.0
    %751 = vmatpush1.msra.mxu0 0.0
    %752 = vmatprep.subr.mxu0 0.0
    %753 = vmatpush1.msra.mxu0 0.0
    %754 = vmatprep.subr.mxu0 0.0
    %755 = vmatpush1.msra.mxu0 0.0
    %756 = vmatprep.subr.mxu0 0.0
    %757 = vmatpush1.msra.mxu0 0.0
    %758 = vmatprep.subr.mxu0 0.0
    %759 = vmatpush1.msra.mxu0 0.0
    %760 = vmatprep.subr.mxu0 0.0
    %761 = vmatpush1.msra.mxu0 0.0
    %762 = vmatprep.subr.mxu0 0.0
    %763 = vmatpush1.msra.mxu0 0.0
    %764 = vmatprep.subr.mxu0 0.0
    %765 = vmatpush1.msra.mxu0 0.0
    %766 = vmatprep.subr.mxu0 0.0
    %767 = vmatpush1.msra.mxu0 0.0
    %768 = vmatprep.mubr.f32.mxu0 0.0
    %769 = vmatmul.mubr.f32.gmra.mrb[0].mxu0 %v553
    %v770 = vpop.f32.mrb[0].mxu0
    %v771 = vadd.f32 %v686, %v770
    %v772 = vpop.f32.mrb[0].mxu0
    %773 = vmatprep.mubr.f32.mxu0 0.0
    %774 = vmatmul.mubr.f32.gmra.mrb[0].mxu0 %v556
    %v775 = vpop.f32.mrb[0].mxu0
    %v776 = vadd.f32 %v691, %v775
    %v777 = vpop.f32.mrb[0].mxu0
    %778 = vmatprep.mubr.f32.mxu0 0.0
    %779 = vmatmul.mubr.f32.gmra.mrb[0].mxu0 %v567
    %v780 = vpop.f32.mrb[0].mxu0
    %v781 = vadd.f32 %v696, %v780
    %v782 = vpop.f32.mrb[0].mxu0
    %783 = vmatprep.mubr.f32.mxu0 0.0
    %784 = vmatmul.mubr.f32.gmra.mrb[0].mxu0 %v570
    %v785 = vpop.f32.mrb[0].mxu0
    %v786 = vadd.f32 %v701, %v785
    %v787 = vpop.f32.mrb[0].mxu0
    %788 = vdwg.mxu0
    %v789 = vld [vmem:[%s4 + $0x2] sm:$0x1]
    %v790 = vld [vmem:[%s4 + $0x3] sm:$0x1]
    %v791 = vadd.f32 %v771, %v776
    %v792 = vadd.f32 %v791, %v781
    %v793 = vadd.f32 %v792, %v786
    %v794 = vrot.slane %v793, 4
    %v795 = vadd.f32 %v793, %v794
    %v796 = vrot.slane %v795, 2
    %v797 = vadd.f32 %v795, %v796
    %v798 = vrot.slane %v797, 1
    %v799 = vadd.f32 %v797, %v798
    %800 = vmatprep.subr.mxu0 0.0
    %801 = vmatpush1.msra.mxu0 %v330
    %802 = vmatprep.subr.mxu0 0.0
    %803 = vmatpush1.msra.mxu0 %v331
    %804 = vmatprep.subr.mxu0 0.0
    %805 = vmatpush1.msra.mxu0 %v332
    %806 = vmatprep.subr.mxu0 0.0
    %807 = vmatpush1.msra.mxu0 %v333
    %808 = vmatprep.subr.mxu0 0.0
    %809 = vmatpush1.msra.mxu0 %v334
    %810 = vmatprep.subr.mxu0 0.0
    %811 = vmatpush1.msra.mxu0 %v335
    %812 = vmatprep.subr.mxu0 0.0
    %813 = vmatpush1.msra.mxu0 %v336
    %814 = vmatprep.subr.mxu0 0.0
    %815 = vmatpush1.msra.mxu0 %v337
    %816 = vmatprep.subr.mxu0 0.0
    %817 = vmatpush1.msra.mxu0 %v338
    %818 = vmatprep.subr.mxu0 0.0
    %819 = vmatpush1.msra.mxu0 %v339
    %820 = vmatprep.subr.mxu0 0.0
    %821 = vmatpush1.msra.mxu0 %v340
    %822 = vmatprep.subr.mxu0 0.0
    %823 = vmatpush1.msra.mxu0 %v341
    %824 = vmatprep.subr.mxu0 0.0
    %825 = vmatpush1.msra.mxu0 %v342
    %826 = vmatprep.subr.mxu0 0.0
    %827 = vmatpush1.msra.mxu0 %v343
    %828 = vmatprep.subr.mxu0 0.0
    %829 = vmatpush1.msra.mxu0 %v344
    %830 = vmatprep.subr.mxu0 0.0
    %831 = vmatpush1.msra.mxu0 %v345
    %832 = vmatprep.subr.mxu0 0.0
    %833 = vmatpush1.msra.mxu0 0.0
    %834 = vmatprep.subr.mxu0 0.0
    %835 = vmatpush1.msra.mxu0 0.0
    %836 = vmatprep.subr.mxu0 0.0
    %837 = vmatpush1.msra.mxu0 0.0
    %838 = vmatprep.subr.mxu0 0.0
    %839 = vmatpush1.msra.mxu0 0.0
    %840 = vmatprep.subr.mxu0 0.0
    %841 = vmatpush1.msra.mxu0 0.0
    %842 = vmatprep.subr.mxu0 0.0
    %843 = vmatpush1.msra.mxu0 0.0
    %844 = vmatprep.subr.mxu0 0.0
    %845 = vmatpush1.msra.mxu0 0.0
    %846 = vmatprep.subr.mxu0 0.0
    %847 = vmatpush1.msra.mxu0 0.0
    %848 = vmatprep.subr.mxu0 0.0
    %849 = vmatpush1.msra.mxu0 0.0
    %850 = vmatprep.subr.mxu0 0.0
    %851 = vmatpush1.msra.mxu0 0.0
    %852 = vmatprep.subr.mxu0 0.0
    %853 = vmatpush1.msra.mxu0 0.0
    %854 = vmatprep.subr.mxu0 0.0
    %855 = vmatpush1.msra.mxu0 0.0
    %856 = vmatprep.subr.mxu0 0.0
    %857 = vmatpush1.msra.mxu0 0.0
    %858 = vmatprep.subr.mxu0 0.0
    %859 = vmatpush1.msra.mxu0 0.0
    %860 = vmatprep.subr.mxu0 0.0
    %861 = vmatpush1.msra.mxu0 0.0
    %862 = vmatprep.subr.mxu0 0.0
    %863 = vmatpush1.msra.mxu0 0.0
    %864 = vmatprep.mubr.f32.mxu0 0.0
    %865 = vmatmul.mubr.f32.gmra.mrb[0].mxu0 %v799
    %v866 = vpop.f32.mrb[0].mxu0
    %v867 = vadd.f32 0.0, %v866
    %v868 = vpop.f32.mrb[0].mxu0
    %869 = vdwg.mxu0
    %v870 = vmul.f32 %v867, 0.001953125
    %v871 = vlaneseq
    %v872 = vshrl.u32 %v871, 7
    %v873 = vsub.s32 0, %v872
    %v874 = vrot.slane %v870, %v873
    %v875 = vsub.f32 %v771, %v874
    %v876 = vsub.f32 %v776, %v874
    %v877 = vsub.f32 %v781, %v874
    %v878 = vsub.f32 %v786, %v874
    %v879 = vmul.f32 %v875, %v875
    %v880 = vmul.f32 %v876, %v876
    %v881 = vmul.f32 %v877, %v877
    %v882 = vmul.f32 %v878, %v878
    %v883 = vadd.f32 %v879, %v880
    %v884 = vadd.f32 %v883, %v881
    %v885 = vadd.f32 %v884, %v882
    %v886 = vrot.slane %v885, 4
    %v887 = vadd.f32 %v885, %v886
    %v888 = vrot.slane %v887, 2
    %v889 = vadd.f32 %v887, %v888
    %v890 = vrot.slane %v889, 1
    %v891 = vadd.f32 %v889, %v890
    %892 = vmatprep.subr.mxu0 0.0
    %893 = vmatpush1.msra.mxu0 %v330
    %894 = vmatprep.subr.mxu0 0.0
    %895 = vmatpush1.msra.mxu0 %v331
    %896 = vmatprep.subr.mxu0 0.0
    %897 = vmatpush1.msra.mxu0 %v332
    %898 = vmatprep.subr.mxu0 0.0
    %899 = vmatpush1.msra.mxu0 %v333
    %900 = vmatprep.subr.mxu0 0.0
    %901 = vmatpush1.msra.mxu0 %v334
    %902 = vmatprep.subr.mxu0 0.0
    %903 = vmatpush1.msra.mxu0 %v335
    %904 = vmatprep.subr.mxu0 0.0
    %905 = vmatpush1.msra.mxu0 %v336
    %906 = vmatprep.subr.mxu0 0.0
    %907 = vmatpush1.msra.mxu0 %v337
    %908 = vmatprep.subr.mxu0 0.0
    %909 = vmatpush1.msra.mxu0 %v338
    %910 = vmatprep.subr.mxu0 0.0
    %911 = vmatpush1.msra.mxu0 %v339
    %912 = vmatprep.subr.mxu0 0.0
    %913 = vmatpush1.msra.mxu0 %v340
    %914 = vmatprep.subr.mxu0 0.0
    %915 = vmatpush1.msra.mxu0 %v341
    %916 = vmatprep.subr.mxu0 0.0
    %917 = vmatpush1.msra.mxu0 %v342
    %918 = vmatprep.subr.mxu0 0.0
    %919 = vmatpush1.msra.mxu0 %v343
    %920 = vmatprep.subr.mxu0 0.0
    %921 = vmatpush1.msra.mxu0 %v344
    %922 = vmatprep.subr.mxu0 0.0
    %923 = vmatpush1.msra.mxu0 %v345
    %924 = vmatprep.subr.mxu0 0.0
    %925 = vmatpush1.msra.mxu0 0.0
    %926 = vmatprep.subr.mxu0 0.0
    %927 = vmatpush1.msra.mxu0 0.0
    %928 = vmatprep.subr.mxu0 0.0
    %929 = vmatpush1.msra.mxu0 0.0
    %930 = vmatprep.subr.mxu0 0.0
    %931 = vmatpush1.msra.mxu0 0.0
    %932 = vmatprep.subr.mxu0 0.0
    %933 = vmatpush1.msra.mxu0 0.0
    %934 = vmatprep.subr.mxu0 0.0
    %935 = vmatpush1.msra.mxu0 0.0
    %936 = vmatprep.subr.mxu0 0.0
    %937 = vmatpush1.msra.mxu0 0.0
    %938 = vmatprep.subr.mxu0 0.0
    %939 = vmatpush1.msra.mxu0 0.0
    %940 = vmatprep.subr.mxu0 0.0
    %941 = vmatpush1.msra.mxu0 0.0
    %942 = vmatprep.subr.mxu0 0.0
    %943 = vmatpush1.msra.mxu0 0.0
    %944 = vmatprep.subr.mxu0 0.0
    %945 = vmatpush1.msra.mxu0 0.0
    %946 = vmatprep.subr.mxu0 0.0
    %947 = vmatpush1.msra.mxu0 0.0
    %948 = vmatprep.subr.mxu0 0.0
    %949 = vmatpush1.msra.mxu0 0.0
    %950 = vmatprep.subr.mxu0 0.0
    %951 = vmatpush1.msra.mxu0 0.0
    %952 = vmatprep.subr.mxu0 0.0
    %953 = vmatpush1.msra.mxu0 0.0
    %954 = vmatprep.subr.mxu0 0.0
    %955 = vmatpush1.msra.mxu0 0.0
    %956 = vmatprep.mubr.f32.mxu0 0.0
    %957 = vmatmul.mubr.f32.gmra.mrb[0].mxu0 %v891
    %v958 = vpop.f32.mrb[0].mxu0
    %v959 = vadd.f32 0.0, %v958
    %v960 = vpop.f32.mrb[0].mxu0
    %961 = vdwg.mxu0
    %v962 = vmul.f32 %v959, 0.001953125
    %v963 = vadd.f32 %v962, 1e-05
    %v964 = vrsqrt.pop %v963
    %v965 = vmul.f32 %v789, %v964
    %v966 = vmul.f32 %v870, %v965
    %v967 = vsub.f32 %v790, %v966
    %v968 = vlaneseq
    %v969 = vshrl.u32 %v968, 7
    %v970 = vsub.s32 0, %v969
    %v971 = vrot.slane %v965, %v970
    %v972 = vmul.f32 %v771, %v971
    %v973 = vmul.f32 %v776, %v971
    %v974 = vmul.f32 %v781, %v971
    %v975 = vmul.f32 %v786, %v971
    %v976 = vlaneseq
    %v977 = vshrl.u32 %v976, 7
    %v978 = vsub.s32 0, %v977
    %v979 = vrot.slane %v967, %v978
    %v980 = vadd.f32 %v972, %v979
    %v981 = vadd.f32 %v973, %v979
    %v982 = vadd.f32 %v974, %v979
    %v983 = vadd.f32 %v975, %v979
    %v984 = vadd.f32 %v980, %v76
    %v985 = vadd.f32 %v981, %v77
    %v986 = vadd.f32 %v982, %v78
    %v987 = vadd.f32 %v983, %v79
    %v988 = vmax.f32 %v984, 0.0
    %v989 = vmax.f32 %v985, 0.0
    %v990 = vmax.f32 %v986, 0.0
    %v991 = vmax.f32 %v987, 0.0
    %992 = vst [vmem:[#allocation10] sm:$0xff] %v988
    %993 = vst [vmem:[#allocation10 + $0x8] sm:$0xff] %v989
    %994 = vst [vmem:[#allocation10 + $0x10] sm:$0xff] %v990
    %995 = vst [vmem:[#allocation10 + $0x18] sm:$0xff] %v991
    // Predicated region
    $region38: #{tpu_custom_call.1} parent=1 // pred_check
      _
    $region39: #{tpu_custom_call.1} parent=1 // pred_check_branch
      %997 = sbr.rel (0) target = $region41
    $region40: #{tpu_custom_call.1} parent=1 // pred_region
      %s999 = ssub.s32 512, 512
      %1000 = vsyncadd [#allocation4], %s999
      %s1001 = sshll.u32 [#allocation10], 4
      %s1002 = int_to_ptr.vmem [resolvable:$true] %s1001
      %1007 = dma.vmem_to_hbm [thread:$0]  %s1002, 512, %s5, [#allocation4], 128, 128, 8
    $region41: #{tpu_custom_call.1} parent=1 // pred_fallthru
      _
    // Predicated region
    $region42: #{tpu_custom_call.1} parent=1 // pred_check
      _
    $region43: #{tpu_custom_call.1} parent=1 // pred_check_branch
      %1009 = sbr.rel (0) target = $region45
    $region44: #{tpu_custom_call.1} parent=1 // pred_region
      %1010 = dma.done [#allocation4], 512
    $region45: #{tpu_custom_call.1} parent=1 // pred_fallthru
      _
    %1011 = vsyncpa [#allocation3], 1
    %1012 = vsyncpa [#allocation6], 1
    %1013 = vsyncpa [#allocation9], 1
    %1014 = vsyncpa [#allocation4], 1

</llo_original>
